<compile_context>
chip_gen: v7x
topology: tpu7x:2x2x1
jax: 0.10.0
libtpu: 0.0.40
codegen_flags: <defaults>
</compile_context>

<pallas_src>
import functools

import jax
import jax.numpy as jnp
from jax.experimental import pallas as pl
from jax.experimental.pallas import tpu as pltpu


def bert_linear_head_kernel(map_ref, hid_ref, w_ref, b_ref, out_ref, *, mxu_dtype):
    # map_ref : (Bt, I, J)   word->subtoken mapping block (batch tile)
    # hid_ref : (Bt, J, H)   last_hidden_state block
    # w_ref   : (H, Lp)      output projection (transposed, lane-padded)
    # b_ref   : (1, Lp)      bias (lane-padded)
    # out_ref : (Bt, I, Lp)  logits (lane-padded)
    Bt, J, H = hid_ref.shape
    Lp = w_ref.shape[1]

    m = map_ref[...]                           # (Bt, I, J)  f32
    h = hid_ref[...]                           # (Bt, J, H)  f32
    w = w_ref[...]                             # (H, Lp)
    b = b_ref[...]                             # (1, Lp)

    # Reassociated contraction: (m @ h) @ W == m @ (h @ W); the row-wise
    # normalization is linear so it can be applied to the final (I, Lp) result.
    hw = jnp.dot(
        h.reshape(Bt * J, H).astype(mxu_dtype),
        w.astype(mxu_dtype),
        preferred_element_type=jnp.float32,
    ).reshape(Bt, J, Lp)                       # (Bt, J, Lp) f32 accumulator

    proj = jnp.einsum(
        "bij,bjl->bil",
        m.astype(mxu_dtype),
        hw.astype(mxu_dtype),
        preferred_element_type=jnp.float32,
    )                                          # (Bt, I, Lp)

    # denom = clamp(sum(mapping, dim=2, keepdim=True), min=1); divide via EUP
    # reciprocal on the small (Bt, I, 1) tensor, multiply on (Bt, I, Lp).
    denom = jnp.maximum(jnp.sum(m, axis=2, keepdims=True), 1.0)   # (Bt, I, 1)
    inv = pl.reciprocal(denom, approx=True)

    out_ref[...] = (proj * inv + b).astype(out_ref.dtype)


def _pick_batch_tile(B, bytes_per_batch):
    """Largest divisor of B whose block is <= ~4 MiB, keeping >=2 grid steps
    when B >= 2 so the 'parallel' batch axis can feed both v7x TensorCores."""
    budget = 4 * 1024 * 1024
    cap = max(1, B // 2) if B >= 2 else 1
    best = 1
    for bt in range(1, cap + 1):
        if B % bt == 0 and bt * bytes_per_batch <= budget:
            best = bt
    return best


def bert_linear_head(mapping_matrix, last_hidden_state, w_out, b_out,
                     *, mxu_dtype=jnp.bfloat16):
    """mapping_matrix: (B, I, J) f32; last_hidden_state: (B, J, H) f32;
    w_out: (H, L) f32 (torch weight transposed); b_out: (1, L) f32
    -> logits (B, I, L) f32."""
    B, I, J = mapping_matrix.shape
    _, _, H = last_hidden_state.shape
    L = w_out.shape[1]

    # Lane-dense label dim: pad L up to a multiple of 128 (unmasked stores,
    # full MXU columns). Padding is sliced off on the way out.
    Lp = ((L + 127) // 128) * 128
    w_p = jnp.pad(w_out, ((0, 0), (0, Lp - L)))
    b_p = jnp.pad(b_out, ((0, 0), (0, Lp - L)))

    bytes_per_batch = 4 * (I * J + J * H + I * Lp)
    Bt = _pick_batch_tile(B, bytes_per_batch)
    grid = (B // Bt,)

    # Advisory cost estimate with the reassociated FLOP count.
    flops = 2 * B * (J * H * Lp + I * J * Lp) + 3 * B * I * Lp
    bytes_accessed = 4 * (B * I * J + B * J * H + H * Lp + Lp + B * I * Lp)
    cost = pl.CostEstimate(flops=flops, transcendentals=B * I,
                           bytes_accessed=bytes_accessed)

    kernel = functools.partial(bert_linear_head_kernel, mxu_dtype=mxu_dtype)

    out_padded = pl.pallas_call(
        kernel,
        out_shape=jax.ShapeDtypeStruct((B, I, Lp), jnp.float32),
        grid_spec=pltpu.PrefetchScalarGridSpec(
            num_scalar_prefetch=0,
            grid=grid,
            in_specs=[
                pl.BlockSpec((Bt, I, J), lambda b: (b, 0, 0)),
                pl.BlockSpec((Bt, J, H), lambda b: (b, 0, 0)),
                # Constant block index -> W/bias stay resident across the grid.
                pl.BlockSpec((H, Lp), lambda b: (0, 0)),
                pl.BlockSpec((1, Lp), lambda b: (0, 0)),
            ],
            out_specs=pl.BlockSpec((Bt, I, Lp), lambda b: (b, 0, 0)),
        ),
        compiler_params=pltpu.CompilerParams(
            dimension_semantics=("parallel",)),
        cost_estimate=cost,
    )(mapping_matrix, last_hidden_state, w_p, b_p)

    return out_padded[..., :L]


def reference(mapping_matrix, last_hidden_state, w_out, b_out):
    summ = jnp.einsum("bij,bjk->bik", mapping_matrix, last_hidden_state)
    denom = jnp.maximum(jnp.sum(mapping_matrix, axis=2, keepdims=True), 1.0)
    res = summ / denom
    return res @ w_out + b_out[None]            # (B, I, L)


if __name__ == "__main__":
    B, I, J, H, L = 2, 8, 8, 32, 4   # batch, words, tokens, hidden, num_labels

    key = jax.random.PRNGKey(0)
    k_hid, k_map, k_w, k_b = jax.random.split(key, 4)

    # Synthetic stand-in for bert_output.last_hidden_state
    last_hidden_state = jax.random.normal(k_hid, (B, J, H), dtype=jnp.float32)
    # Word->subtoken mapping matrix (0/1 entries, some rows all-zero -> clamp path)
    mapping_matrix = (jax.random.uniform(k_map, (B, I, J)) > 0.6).astype(jnp.float32)

    # linear_output params: torch weight (L, H) -> stored transposed as (H, L)
    w_torch = jax.random.normal(k_w, (L, H), dtype=jnp.float32) * 0.05
    b_out = jax.random.normal(k_b, (1, L), dtype=jnp.float32) * 0.05
    w_out = w_torch.T                                  # (H, L)

    ref = reference(mapping_matrix, last_hidden_state, w_out, b_out)

    # f32-MXU variant: only approx-reciprocal differs from the reference.
    logits_f32 = bert_linear_head(mapping_matrix, last_hidden_state, w_out, b_out,
                                  mxu_dtype=jnp.float32)
    logits_f32 = jax.block_until_ready(logits_f32)
    assert logits_f32.shape == (B, I, L)
    assert jnp.allclose(logits_f32, ref, atol=1e-3, rtol=1e-3), "f32 mismatch"

    # bf16-MXU fast path (f32 accumulators): loosened tolerance per bf16 mantissa.
    logits = bert_linear_head(mapping_matrix, last_hidden_state, w_out, b_out)
    logits = jax.block_until_ready(logits)
    assert logits.shape == (B, I, L)
    assert jnp.allclose(logits, ref, atol=2e-2, rtol=2e-2), "bf16 mismatch"

    print("KERNEL_OK")
</pallas_src>

<mosaic_0001>
module attributes {stable_mosaic.version = 11 : i64} {
  func.func @bert_linear_head_kernel(%arg0: i32, %arg1: memref<1x8x8xf32, #tpu.memory_space<vmem>>, %arg2: memref<1x8x32xf32, #tpu.memory_space<vmem>>, %arg3: memref<32x128xf32, #tpu.memory_space<vmem>>, %arg4: memref<1x128xf32, #tpu.memory_space<vmem>>, %arg5: memref<1x8x128xf32, #tpu.memory_space<vmem>>) attributes {dimension_semantics = [#tpu.dimension_semantics<parallel>], iteration_bounds = array<i64: 2>, scalar_prefetch = 0 : i64, scratch_operands = 0 : i64, tpu.core_type = #tpu.core_type<tc>, window_params = [{transform_indices = @transform_0, window_bounds = array<i64: 1, 8, 8>}, {transform_indices = @transform_1, window_bounds = array<i64: 1, 8, 32>}, {pipeline_mode = #tpu.pipeline_mode<synchronous>, transform_indices = @transform_2, window_bounds = array<i64: 32, 128>}, {pipeline_mode = #tpu.pipeline_mode<synchronous>, transform_indices = @transform_3, window_bounds = array<i64: 1, 128>}, {transform_indices = @transform_4, window_bounds = array<i64: 1, 8, 128>}]} {
    %c0 = arith.constant 0 : index
    %c0_0 = arith.constant 0 : index
    %c0_1 = arith.constant 0 : index
    %0 = vector.load %arg1[%c0, %c0_0, %c0_1] : memref<1x8x8xf32, #tpu.memory_space<vmem>>, vector<1x8x8xf32>
    %c0_2 = arith.constant 0 : index
    %c0_3 = arith.constant 0 : index
    %c0_4 = arith.constant 0 : index
    %1 = vector.load %arg2[%c0_2, %c0_3, %c0_4] : memref<1x8x32xf32, #tpu.memory_space<vmem>>, vector<1x8x32xf32>
    %c0_5 = arith.constant 0 : index
    %c0_6 = arith.constant 0 : index
    %2 = vector.load %arg3[%c0_5, %c0_6] : memref<32x128xf32, #tpu.memory_space<vmem>>, vector<32x128xf32>
    %c0_7 = arith.constant 0 : index
    %c0_8 = arith.constant 0 : index
    %3 = vector.load %arg4[%c0_7, %c0_8] : memref<1x128xf32, #tpu.memory_space<vmem>>, vector<1x128xf32>
    %4 = vector.shape_cast %1 : vector<1x8x32xf32> to vector<8x32xf32>
    %cst = arith.constant dense<0.000000e+00> : vector<8x128xf32>
    %5 = tpu.matmul %4, %2, %cst {dimension_numbers = #tpu.dot_dimension_numbers<[1], [0], [0], [1], [0, 0, 1, 1], [], []>} : vector<8x32xf32>, vector<32x128xf32>, vector<8x128xf32> -> vector<8x128xf32>
    %6 = vector.shape_cast %5 : vector<8x128xf32> to vector<1x8x128xf32>
    "tpu.trace_start"() <{level = 10 : i32, message = "bij,bjl->bil"}> : () -> ()
    %cst_9 = arith.constant dense<0.000000e+00> : vector<1x8x128xf32>
    %7 = tpu.matmul %0, %6, %cst_9 {dimension_numbers = #tpu.dot_dimension_numbers<[2], [1], [1], [2], [0, 0, 0, 1, 1, 2], [0], [0]>} : vector<1x8x8xf32>, vector<1x8x128xf32>, vector<1x8x128xf32> -> vector<1x8x128xf32>
    "tpu.trace_stop"() : () -> ()
    %cst_10 = arith.constant dense<0.000000e+00> : vector<1x8xf32>
    %8 = vector.multi_reduction <add>, %0, %cst_10 [2] : vector<1x8x8xf32> to vector<1x8xf32>
    %9 = vector.shape_cast %8 : vector<1x8xf32> to vector<1x8x1xf32>
    %cst_11 = arith.constant 1.000000e+00 : f32
    %10 = vector.broadcast %cst_11 : f32 to vector<1x8x1xf32>
    %11 = arith.maximumf %9, %10 : vector<1x8x1xf32>
    %12 = tpu.reciprocal %11 {approx = true} : vector<1x8x1xf32> -> vector<1x8x1xf32>
    %13 = vector.broadcast %12 : vector<1x8x1xf32> to vector<1x8x128xf32>
    %14 = arith.mulf %7, %13 : vector<1x8x128xf32>
    %15 = vector.shape_cast %3 : vector<1x128xf32> to vector<1x1x128xf32>
    %16 = vector.broadcast %15 : vector<1x1x128xf32> to vector<1x8x128xf32>
    %17 = arith.addf %14, %16 : vector<1x8x128xf32>
    %c0_12 = arith.constant 0 : index
    %c0_13 = arith.constant 0 : index
    %c0_14 = arith.constant 0 : index
    %18 = vector.load %arg5[%c0_12, %c0_13, %c0_14] : memref<1x8x128xf32, #tpu.memory_space<vmem>>, vector<1x8x128xf32>
    tpu.vector_store %arg5[%c0_12, %c0_13, %c0_14], %17 {strides = array<i32>} : memref<1x8x128xf32, #tpu.memory_space<vmem>>, vector<1x8x128xf32>,
    return
  }
  func.func @transform_0(%arg0: i32) -> (i32, i32, i32) {
    %c0_i32 = arith.constant 0 : i32
    %c0_i32_0 = arith.constant 0 : i32
    %c0_i32_1 = arith.constant 0 : i32
    return %arg0, %c0_i32, %c0_i32_0 : i32, i32, i32
  }
  func.func @transform_1(%arg0: i32) -> (i32, i32, i32) {
    %c0_i32 = arith.constant 0 : i32
    %c0_i32_0 = arith.constant 0 : i32
    %c0_i32_1 = arith.constant 0 : i32
    return %arg0, %c0_i32, %c0_i32_0 : i32, i32, i32
  }
  func.func @transform_2(%arg0: i32) -> (i32, i32) {
    %c0_i32 = arith.constant 0 : i32
    %c0_i32_0 = arith.constant 0 : i32
    %c0_i32_1 = arith.constant 0 : i32
    return %c0_i32, %c0_i32_0 : i32, i32
  }
  func.func @transform_3(%arg0: i32) -> (i32, i32) {
    %c0_i32 = arith.constant 0 : i32
    %c0_i32_0 = arith.constant 0 : i32
    %c0_i32_1 = arith.constant 0 : i32
    return %c0_i32, %c0_i32_0 : i32, i32
  }
  func.func @transform_4(%arg0: i32) -> (i32, i32, i32) {
    %c0_i32 = arith.constant 0 : i32
    %c0_i32_0 = arith.constant 0 : i32
    %c0_i32_1 = arith.constant 0 : i32
    return %arg0, %c0_i32, %c0_i32_0 : i32, i32, i32
  }
}

</mosaic_0001>

<llo_original>
// kernel: tpu_custom_call.1
$region0: #{tpu_custom_call.1}
  #allocation0 [shape = 'u32[]', space=smem, size = 0x4, offset = 0x4, fixed_abs, tag = 'smem constant byte address 0x4 - core index']
  #allocation1 [shape = 'u32[144,128]{1,0:T(1,128)}', space=vmem, size = 0x12000, scoped, tag = 'internal scratch']
  %s0 = inlined_call_operand.hbm [shape: f32[2,8,8], index: 0, kind: input, shape index: {}]
  %s1 = inlined_call_operand.hbm [shape: f32[2,8,32], index: 1, kind: input, shape index: {}]
  %s2 = inlined_call_operand.hbm [shape: f32[32,128], index: 2, kind: input, shape index: {}]
  %s3 = inlined_call_operand.vmem [shape: f32[1,128], index: 3, kind: input, shape index: {}]
  %s4 = inlined_call_operand.hbm [shape: f32[2,8,128], index: 4, kind: output, shape index: {}]
  %s5 = sld [smem:[#allocation0]]
  $region61: #{tpu_custom_call.1} parent=0
    _
  %s7 = ssub.s32 1, %s5
  %s8 = scalar_select 0, %s7, %s5
  $region1: #{tpu_custom_call.1} parent=0
    #allocation2 [shape = 'u8[8192]{0}', space=vmem, size = 0x2000, scoped, tag = 'input window, operand 0']
    #allocation3 [shape = 's32[2]{0}', space=sflag, size = 0x8, scoped, tag = 'scoped memory for tpu_custom_call.1']
    #allocation4 [shape = 's32[2]{0}', space=sflag, size = 0x8, scoped, tag = 'scoped memory for tpu_custom_call.1']
    #allocation5 [shape = 'u8[8192]{0}', space=vmem, size = 0x2000, scoped, tag = 'input window, operand 1']
    #allocation6 [shape = 's32[2]{0}', space=sflag, size = 0x8, scoped, tag = 'scoped memory for tpu_custom_call.1']
    #allocation7 [shape = 'u8[16384]{0}', space=vmem, size = 0x4000, scoped, tag = 'input window, operand 2, single buffered']
    #allocation8 [shape = 'u8[8192]{0}', space=vmem, size = 0x2000, scoped, tag = 'output window, operand 0']
    %9 = vsyncpa [#allocation3], 0
    %s10 = scalar_lea.sflag [#allocation3], 1
    %11 = vsyncpa %s10, 0
    %12 = vsyncpa [#allocation6], 0
    %s13 = scalar_lea.sflag [#allocation6], 1
    %14 = vsyncpa %s13, 0
    %15 = vsyncpa [#allocation4], 0
    %s16 = scalar_lea.sflag [#allocation4], 1
    %17 = vsyncpa %s16, 0
    loop: start=0, step=1, limit=4
    $region2: #{tpu_custom_call.1} parent=1 // loop_pre_header
      _
    $region3: #{tpu_custom_call.1} parent=1 // loop_header
      %s19 = sphi 0, %s23
      %p20 = scmp.ge.s32.totalorder %s19, 4
      %s29 = sphi 0, %s31
      %s32 = sphi 0, %s29
      %s33 = sphi 0, %s32
      %s49 = sphi 0, %s33
      %s55 = sphi 0, %s57
      %s58 = sphi 0, %s55
      %s59 = sphi 0, %s58
      %s75 = sphi 0, %s59
      %s79 = sphi 0, %s79
      %s81 = sphi 0, %s79
      %s82 = sphi 0, %s81
      %s96 = sphi 0, %s82
      %s100 = sphi 0, %s100
      %s102 = sphi 0, %s100
      %s103 = sphi 0, %s102
      %s117 = sphi 0, %s103
      %s123 = sphi 0, %s125
      %s126 = sphi 0, %s123
      %s127 = sphi 0, %s126
      %s143 = sphi 0, %s127
    $region4: #{tpu_custom_call.1} parent=1 // loop_header_branch
      %22 = sbr.rel (%p20) target = $region8
    $region5: #{tpu_custom_call.1} parent=1 // loop_body
      %s24 = ssub.s32 %s19, 1
      %s25 = ssub.s32 %s19, 2
      %s26 = sadd.s32 %s19, 1
      %s27 = ssub.s32 %s19, %s26
      %p28 = scmp.eq.s32.totalorder %s27, 0
      %s30 = sadd.s32 %s29, 1
      %s31 = scalar_select %p28, %s29, %s30
      %p34 = pneg %p28
      %p35 = scmp.eq.s32.totalorder %s19, 1
      %p36 = por %p34, %p35
      %p37 = scmp.ne.s32.totalorder %s29, %s32
      %p38 = scmp.eq.s32.totalorder %s19, 0
      %p39 = por %p37, %p38
      %p40 = scmp.ne.s32.totalorder %s29, %s32
      %p41 = scmp.eq.s32.totalorder %s24, 1
      %p42 = por %p40, %p41
      %p43 = scmp.ne.s32.totalorder %s32, %s33
      %p44 = scmp.eq.s32.totalorder %s24, 0
      %p45 = por %p43, %p44
      %p46 = scmp.ne.s32.totalorder %s32, %s33
      %p47 = scmp.eq.s32.totalorder %s25, 1
      %p48 = por %p46, %p47
      %p50 = scmp.ne.s32.totalorder %s33, %s49
      %p51 = scmp.eq.s32.totalorder %s25, 0
      %p52 = por %p50, %p51
      %s53 = ssub.s32 %s19, %s26
      %p54 = scmp.eq.s32.totalorder %s53, 0
      %s56 = sadd.s32 %s55, 1
      %s57 = scalar_select %p54, %s55, %s56
      %p60 = pneg %p54
      %p61 = scmp.eq.s32.totalorder %s19, 1
      %p62 = por %p60, %p61
      %p63 = scmp.ne.s32.totalorder %s55, %s58
      %p64 = scmp.eq.s32.totalorder %s19, 0
      %p65 = por %p63, %p64
      %p66 = scmp.ne.s32.totalorder %s55, %s58
      %p67 = scmp.eq.s32.totalorder %s24, 1
      %p68 = por %p66, %p67
      %p69 = scmp.ne.s32.totalorder %s58, %s59
      %p70 = scmp.eq.s32.totalorder %s24, 0
      %p71 = por %p69, %p70
      %p72 = scmp.ne.s32.totalorder %s58, %s59
      %p73 = scmp.eq.s32.totalorder %s25, 1
      %p74 = por %p72, %p73
      %p76 = scmp.ne.s32.totalorder %s59, %s75
      %p77 = scmp.eq.s32.totalorder %s25, 0
      %p78 = por %p76, %p77
      %s80 = sadd.s32 %s79, 1
      %p83 = scmp.eq.s32.totalorder %s19, 1
      %p84 = scmp.ne.s32.totalorder %s79, %s81
      %p85 = scmp.eq.s32.totalorder %s19, 0
      %p86 = por %p84, %p85
      %p87 = scmp.ne.s32.totalorder %s79, %s81
      %p88 = scmp.eq.s32.totalorder %s24, 1
      %p89 = por %p87, %p88
      %p90 = scmp.ne.s32.totalorder %s81, %s82
      %p91 = scmp.eq.s32.totalorder %s24, 0
      %p92 = por %p90, %p91
      %p93 = scmp.ne.s32.totalorder %s81, %s82
      %p94 = scmp.eq.s32.totalorder %s25, 1
      %p95 = por %p93, %p94
      %p97 = scmp.ne.s32.totalorder %s82, %s96
      %p98 = scmp.eq.s32.totalorder %s25, 0
      %p99 = por %p97, %p98
      %s101 = sadd.s32 %s100, 1
      %p104 = scmp.eq.s32.totalorder %s19, 1
      %p105 = scmp.ne.s32.totalorder %s100, %s102
      %p106 = scmp.eq.s32.totalorder %s19, 0
      %p107 = por %p105, %p106
      %p108 = scmp.ne.s32.totalorder %s100, %s102
      %p109 = scmp.eq.s32.totalorder %s24, 1
      %p110 = por %p108, %p109
      %p111 = scmp.ne.s32.totalorder %s102, %s103
      %p112 = scmp.eq.s32.totalorder %s24, 0
      %p113 = por %p111, %p112
      %p114 = scmp.ne.s32.totalorder %s102, %s103
      %p115 = scmp.eq.s32.totalorder %s25, 1
      %p116 = por %p114, %p115
      %p118 = scmp.ne.s32.totalorder %s103, %s117
      %p119 = scmp.eq.s32.totalorder %s25, 0
      %p120 = por %p118, %p119
      %s121 = ssub.s32 %s19, %s26
      %p122 = scmp.eq.s32.totalorder %s121, 0
      %s124 = sadd.s32 %s123, 1
      %s125 = scalar_select %p122, %s123, %s124
      %p128 = pneg %p122
      %p129 = scmp.eq.s32.totalorder %s19, 1
      %p130 = por %p128, %p129
      %p131 = scmp.ne.s32.totalorder %s123, %s126
      %p132 = scmp.eq.s32.totalorder %s19, 0
      %p133 = por %p131, %p132
      %p134 = scmp.ne.s32.totalorder %s123, %s126
      %p135 = scmp.eq.s32.totalorder %s24, 1
      %p136 = por %p134, %p135
      %p137 = scmp.ne.s32.totalorder %s126, %s127
      %p138 = scmp.eq.s32.totalorder %s24, 0
      %p139 = por %p137, %p138
      %p140 = scmp.ne.s32.totalorder %s126, %s127
      %p141 = scmp.eq.s32.totalorder %s25, 1
      %p142 = por %p140, %p141
      %p144 = scmp.ne.s32.totalorder %s127, %s143
      %p145 = scmp.eq.s32.totalorder %s25, 0
      %p146 = por %p144, %p145
      %p147 = scmp.le.s32.totalorder 1, %s19
      %p148 = scmp.lt.s32.totalorder %s19, 3
      %p149 = pnand %p147, %p148
      %p150 = pneg %p149
      // Predicated region
      $region9: #{tpu_custom_call.1} parent=5 // pred_check
        _
      $region10: #{tpu_custom_call.1} parent=5 // pred_check_branch
        %152 = sbr.rel (%p149) target = $region12
      $region11: #{tpu_custom_call.1} parent=5 // pred_region
        %s153 = ssub.s32 %s19, 1
        // Predicated region
        $region13: #{tpu_custom_call.1} parent=11 // pred_check
          %p154 = pneg %p92
        $region14: #{tpu_custom_call.1} parent=11 // pred_check_branch
          %156 = sbr.rel (%p154) target = $region16
        $region15: #{tpu_custom_call.1} parent=11 // pred_region
          %s158 = ssub.s32 512, 512
          %159 = vsyncadd [#allocation6], %s158
          %s160 = sshll.u32 [#allocation7], 4
          %s161 = int_to_ptr.vmem [resolvable:$true] %s160
          %166 = dma.hbm_to_vmem [thread:$0]  %s2, 512, %s161, [#allocation6], 128, 128, 8
        $region16: #{tpu_custom_call.1} parent=11 // pred_fallthru
          _
        // Predicated region
        $region17: #{tpu_custom_call.1} parent=11 // pred_check
          %p167 = pneg %p113
        $region18: #{tpu_custom_call.1} parent=11 // pred_check_branch
          %169 = sbr.rel (%p167) target = $region20
        $region19: #{tpu_custom_call.1} parent=11 // pred_region
          _
        $region20: #{tpu_custom_call.1} parent=11 // pred_fallthru
          _
      $region12: #{tpu_custom_call.1} parent=5 // pred_fallthru
        _
      %p170 = scmp.lt.s32.totalorder %s19, 2
      // Predicated region
      $region21: #{tpu_custom_call.1} parent=5 // pred_check
        %p171 = pneg %p170
      $region22: #{tpu_custom_call.1} parent=5 // pred_check_branch
        %173 = sbr.rel (%p171) target = $region24
      $region23: #{tpu_custom_call.1} parent=5 // pred_region
        // Predicated region
        $region25: #{tpu_custom_call.1} parent=23 // pred_check
          %p174 = pneg %p39
        $region26: #{tpu_custom_call.1} parent=23 // pred_check_branch
          %176 = sbr.rel (%p174) target = $region28
        $region27: #{tpu_custom_call.1} parent=23 // pred_region
          %s177 = sand.u32 %s29, 1
          %s178 = scalar_lea.sflag [#allocation3], %s177
          %s179 = sand.u32 %s29, 1
          %s180 = smul.addr %s179, 8
          %s181 = scalar_lea.vmem [#allocation2], %s180
          %s183 = ssub.s32 128, 128
          %184 = vsyncadd %s178, %s183
          %s185 = smul.addr %s19, 128
          %s186 = scalar_lea.hbm %s0, %s185
          %s188 = sshll.u32 %s181, 4
          %s189 = int_to_ptr.vmem [resolvable:$true] %s188
          %191 = dma.hbm_to_vmem [thread:$0]  %s186, 128, %s189, %s178
        $region28: #{tpu_custom_call.1} parent=23 // pred_fallthru
          _
        // Predicated region
        $region29: #{tpu_custom_call.1} parent=23 // pred_check
          %p192 = pneg %p65
        $region30: #{tpu_custom_call.1} parent=23 // pred_check_branch
          %194 = sbr.rel (%p192) target = $region32
        $region31: #{tpu_custom_call.1} parent=23 // pred_region
          %s195 = sand.u32 %s19, 1
          %s196 = scalar_lea.sflag [#allocation6], %s195
          %s197 = sand.u32 %s55, 1
          %s198 = smul.addr %s197, 8
          %s199 = scalar_lea.vmem [#allocation5], %s198
          %s201 = ssub.s32 128, 128
          %202 = vsyncadd %s196, %s201
          %s203 = smul.addr %s19, 128
          %s204 = scalar_lea.hbm %s1, %s203
          %s206 = sshll.u32 %s199, 4
          %s207 = int_to_ptr.vmem [resolvable:$true] %s206
          %209 = dma.hbm_to_vmem [thread:$0]  %s204, 128, %s207, %s196
        $region32: #{tpu_custom_call.1} parent=23 // pred_fallthru
          _
      $region24: #{tpu_custom_call.1} parent=5 // pred_fallthru
        _
      %p210 = scmp.le.s32.totalorder 1, %s19
      %p211 = scmp.lt.s32.totalorder %s19, 3
      %p212 = pnand %p210, %p211
      %p213 = pneg %p212
      // Predicated region
      $region33: #{tpu_custom_call.1} parent=5 // pred_check
        _
      $region34: #{tpu_custom_call.1} parent=5 // pred_check_branch
        %215 = sbr.rel (%p212) target = $region36
      $region35: #{tpu_custom_call.1} parent=5 // pred_region
        %s216 = ssub.s32 %s19, 1
        %s217 = sand.u32 %s32, 1
        %s218 = scalar_lea.sflag [#allocation3], %s217
        %s219 = sand.u32 %s32, 1
        %s220 = smul.addr %s219, 8
        %s221 = scalar_lea.vmem [#allocation2], %s220
        // Predicated region
        $region37: #{tpu_custom_call.1} parent=35 // pred_check
          %p222 = pneg %p45
        $region38: #{tpu_custom_call.1} parent=35 // pred_check_branch
          %224 = sbr.rel (%p222) target = $region40
        $region39: #{tpu_custom_call.1} parent=35 // pred_region
          %225 = dma.done %s218, 128
        $region40: #{tpu_custom_call.1} parent=35 // pred_fallthru
          _
        %s226 = sand.u32 %s24, 1
        %s227 = scalar_lea.sflag [#allocation6], %s226
        %s228 = sand.u32 %s58, 1
        %s229 = smul.addr %s228, 8
        %s230 = scalar_lea.vmem [#allocation5], %s229
        // Predicated region
        $region41: #{tpu_custom_call.1} parent=35 // pred_check
          %p231 = pneg %p71
        $region42: #{tpu_custom_call.1} parent=35 // pred_check_branch
          %233 = sbr.rel (%p231) target = $region44
        $region43: #{tpu_custom_call.1} parent=35 // pred_region
          %234 = dma.done %s227, 128
        $region44: #{tpu_custom_call.1} parent=35 // pred_fallthru
          _
        // Predicated region
        $region45: #{tpu_custom_call.1} parent=35 // pred_check
          %p235 = pneg %p92
        $region46: #{tpu_custom_call.1} parent=35 // pred_check_branch
          %237 = sbr.rel (%p235) target = $region48
        $region47: #{tpu_custom_call.1} parent=35 // pred_region
          %238 = dma.done [#allocation6], 512
        $region48: #{tpu_custom_call.1} parent=35 // pred_fallthru
          _
        %s239 = sand.u32 %s32, 1
        %s240 = scalar_lea.sflag [#allocation3], %s239
        %s241 = sand.u32 %s32, 1
        %s242 = smul.addr %s241, 8
        %s243 = scalar_lea.vmem [#allocation2], %s242
        %p244 = pneg %p45
        %p245 = pneg %p42
        %s246 = sand.u32 %s24, 1
        %s247 = scalar_lea.sflag [#allocation6], %s246
        %s248 = sand.u32 %s58, 1
        %s249 = smul.addr %s248, 8
        %s250 = scalar_lea.vmem [#allocation5], %s249
        %p251 = pneg %p71
        %p252 = pneg %p68
        %p253 = pneg %p92
        %p254 = pneg %p89
        %p255 = pneg %p113
        %p256 = pneg %p110
        %p257 = pneg %p139
        %p258 = pneg %p136
        %s259 = sand.u32 %s126, 1
        %s260 = scalar_lea.sflag [#allocation4], %s259
        %s261 = sand.u32 %s126, 1
        %s262 = smul.addr %s261, 8
        %s263 = scalar_lea.vmem [#allocation8], %s262
        %v264 = vld [vmem:[%s221] sm:$0xff]
        %v265 = vld [vmem:[%s230] sm:$0xff]
        %v266 = vld [vmem:[#allocation7] sm:$0xff]
        %v267 = vld [vmem:[#allocation7 + $0x8] sm:$0xff]
        %v268 = vld [vmem:[#allocation7 + $0x10] sm:$0xff]
        %v269 = vld [vmem:[#allocation7 + $0x18] sm:$0xff]
        %v270 = vld [vmem:[%s3] sm:$0x1]
        %vm271 = vcmask 261120
        %v273 = vsel %vm271, %v265, 0
        %275 = vmatprep.subr.mxu0 0.0
        %276 = vmatpush1.msra.mxu0 %v266
        %277 = vmatprep.subr.mxu0 0.0
        %278 = vmatpush1.msra.mxu0 %v267
        %279 = vmatprep.subr.mxu0 0.0
        %280 = vmatpush1.msra.mxu0 %v268
        %281 = vmatprep.subr.mxu0 0.0
        %282 = vmatpush1.msra.mxu0 %v269
        %283 = vmatprep.subr.mxu0 0.0
        %284 = vmatpush1.msra.mxu0 0.0
        %285 = vmatprep.subr.mxu0 0.0
        %286 = vmatpush1.msra.mxu0 0.0
        %287 = vmatprep.subr.mxu0 0.0
        %288 = vmatpush1.msra.mxu0 0.0
        %289 = vmatprep.subr.mxu0 0.0
        %290 = vmatpush1.msra.mxu0 0.0
        %291 = vmatprep.subr.mxu0 0.0
        %292 = vmatpush1.msra.mxu0 0.0
        %293 = vmatprep.subr.mxu0 0.0
        %294 = vmatpush1.msra.mxu0 0.0
        %295 = vmatprep.subr.mxu0 0.0
        %296 = vmatpush1.msra.mxu0 0.0
        %297 = vmatprep.subr.mxu0 0.0
        %298 = vmatpush1.msra.mxu0 0.0
        %299 = vmatprep.subr.mxu0 0.0
        %300 = vmatpush1.msra.mxu0 0.0
        %301 = vmatprep.subr.mxu0 0.0
        %302 = vmatpush1.msra.mxu0 0.0
        %303 = vmatprep.subr.mxu0 0.0
        %304 = vmatpush1.msra.mxu0 0.0
        %305 = vmatprep.subr.mxu0 0.0
        %306 = vmatpush1.msra.mxu0 0.0
        %307 = vmatprep.subr.mxu0 0.0
        %308 = vmatpush1.msra.mxu0 0.0
        %309 = vmatprep.subr.mxu0 0.0
        %310 = vmatpush1.msra.mxu0 0.0
        %311 = vmatprep.subr.mxu0 0.0
        %312 = vmatpush1.msra.mxu0 0.0
        %313 = vmatprep.subr.mxu0 0.0
        %314 = vmatpush1.msra.mxu0 0.0
        %315 = vmatprep.subr.mxu0 0.0
        %316 = vmatpush1.msra.mxu0 0.0
        %317 = vmatprep.subr.mxu0 0.0
        %318 = vmatpush1.msra.mxu0 0.0
        %319 = vmatprep.subr.mxu0 0.0
        %320 = vmatpush1.msra.mxu0 0.0
        %321 = vmatprep.subr.mxu0 0.0
        %322 = vmatpush1.msra.mxu0 0.0
        %323 = vmatprep.subr.mxu0 0.0
        %324 = vmatpush1.msra.mxu0 0.0
        %325 = vmatprep.subr.mxu0 0.0
        %326 = vmatpush1.msra.mxu0 0.0
        %327 = vmatprep.subr.mxu0 0.0
        %328 = vmatpush1.msra.mxu0 0.0
        %329 = vmatprep.subr.mxu0 0.0
        %330 = vmatpush1.msra.mxu0 0.0
        %331 = vmatprep.subr.mxu0 0.0
        %332 = vmatpush1.msra.mxu0 0.0
        %333 = vmatprep.subr.mxu0 0.0
        %334 = vmatpush1.msra.mxu0 0.0
        %335 = vmatprep.subr.mxu0 0.0
        %336 = vmatpush1.msra.mxu0 0.0
        %337 = vmatprep.subr.mxu0 0.0
        %338 = vmatpush1.msra.mxu0 0.0
        %339 = vmatprep.mubr.f32.mxu0 0.0
        %340 = vmatmul.mubr.f32.gmra.mrb[0].mxu0 %v273
        %v341 = vpop.f32.mrb[0].mxu0
        %v342 = vadd.f32 0.0, %v341
        %v343 = vpop.f32.mrb[0].mxu0
        %344 = vdwg.mxu0
        %vm345 = vcmask 64512
        %v347 = vsel %vm345, %v264, 0
        %349 = vmatprep.subr.mxu0 0.0
        %350 = vmatpush1.msra.mxu0 %v342
        %351 = vmatprep.subr.mxu0 0.0
        %352 = vmatpush1.msra.mxu0 0.0
        %353 = vmatprep.subr.mxu0 0.0
        %354 = vmatpush1.msra.mxu0 0.0
        %355 = vmatprep.subr.mxu0 0.0
        %356 = vmatpush1.msra.mxu0 0.0
        %357 = vmatprep.subr.mxu0 0.0
        %358 = vmatpush1.msra.mxu0 0.0
        %359 = vmatprep.subr.mxu0 0.0
        %360 = vmatpush1.msra.mxu0 0.0
        %361 = vmatprep.subr.mxu0 0.0
        %362 = vmatpush1.msra.mxu0 0.0
        %363 = vmatprep.subr.mxu0 0.0
        %364 = vmatpush1.msra.mxu0 0.0
        %365 = vmatprep.subr.mxu0 0.0
        %366 = vmatpush1.msra.mxu0 0.0
        %367 = vmatprep.subr.mxu0 0.0
        %368 = vmatpush1.msra.mxu0 0.0
        %369 = vmatprep.subr.mxu0 0.0
        %370 = vmatpush1.msra.mxu0 0.0
        %371 = vmatprep.subr.mxu0 0.0
        %372 = vmatpush1.msra.mxu0 0.0
        %373 = vmatprep.subr.mxu0 0.0
        %374 = vmatpush1.msra.mxu0 0.0
        %375 = vmatprep.subr.mxu0 0.0
        %376 = vmatpush1.msra.mxu0 0.0
        %377 = vmatprep.subr.mxu0 0.0
        %378 = vmatpush1.msra.mxu0 0.0
        %379 = vmatprep.subr.mxu0 0.0
        %380 = vmatpush1.msra.mxu0 0.0
        %381 = vmatprep.subr.mxu0 0.0
        %382 = vmatpush1.msra.mxu0 0.0
        %383 = vmatprep.subr.mxu0 0.0
        %384 = vmatpush1.msra.mxu0 0.0
        %385 = vmatprep.subr.mxu0 0.0
        %386 = vmatpush1.msra.mxu0 0.0
        %387 = vmatprep.subr.mxu0 0.0
        %388 = vmatpush1.msra.mxu0 0.0
        %389 = vmatprep.subr.mxu0 0.0
        %390 = vmatpush1.msra.mxu0 0.0
        %391 = vmatprep.subr.mxu0 0.0
        %392 = vmatpush1.msra.mxu0 0.0
        %393 = vmatprep.subr.mxu0 0.0
        %394 = vmatpush1.msra.mxu0 0.0
        %395 = vmatprep.subr.mxu0 0.0
        %396 = vmatpush1.msra.mxu0 0.0
        %397 = vmatprep.subr.mxu0 0.0
        %398 = vmatpush1.msra.mxu0 0.0
        %399 = vmatprep.subr.mxu0 0.0
        %400 = vmatpush1.msra.mxu0 0.0
        %401 = vmatprep.subr.mxu0 0.0
        %402 = vmatpush1.msra.mxu0 0.0
        %403 = vmatprep.subr.mxu0 0.0
        %404 = vmatpush1.msra.mxu0 0.0
        %405 = vmatprep.subr.mxu0 0.0
        %406 = vmatpush1.msra.mxu0 0.0
        %407 = vmatprep.subr.mxu0 0.0
        %408 = vmatpush1.msra.mxu0 0.0
        %409 = vmatprep.subr.mxu0 0.0
        %410 = vmatpush1.msra.mxu0 0.0
        %411 = vmatprep.subr.mxu0 0.0
        %412 = vmatpush1.msra.mxu0 0.0
        %413 = vmatprep.mubr.f32.mxu0 0.0
        %414 = vmatmul.mubr.f32.gmra.mrb[0].mxu0 %v347
        %v415 = vpop.f32.mrb[0].mxu0
        %v416 = vadd.f32 0.0, %v415
        %v417 = vpop.f32.mrb[0].mxu0
        %418 = vdwg.mxu0
        %v419 = vsel %vm345, %v264, 0.0
        %420 = vadd.xlane.f32.xlu0 %v419
        %v421 = vpop.xlane.xlu0 %420
        %v422 = vmax.f32 %v421, 1.0
        %v423 = vrcp.pop %v422
        %v424 = vmul.f32 %v416, %v423
        %v426 = vlaneseq
        %v427 = vshrl.u32 %v426, 7
        %v428 = vsub.s32 0, %v427
        %v429 = vrot.slane %v270, %v428
        %v431 = vadd.f32 %v424, %v429
        %432 = vst [vmem:[%s263] sm:$0xff] %v431
        %s433 = sand.u32 %s126, 1
        %s434 = scalar_lea.sflag [#allocation4], %s433
        %s435 = sand.u32 %s126, 1
        %s436 = smul.addr %s435, 8
        %s437 = scalar_lea.vmem [#allocation8], %s436
        // Predicated region
        $region49: #{tpu_custom_call.1} parent=35 // pred_check
          %p438 = pneg %p136
        $region50: #{tpu_custom_call.1} parent=35 // pred_check_branch
          %440 = sbr.rel (%p438) target = $region52
        $region51: #{tpu_custom_call.1} parent=35 // pred_region
          %s442 = ssub.s32 128, 128
          %443 = vsyncadd %s434, %s442
          %s444 = smul.addr %s24, 128
          %s445 = scalar_lea.hbm %s4, %s444
          %s447 = sshll.u32 %s437, 4
          %s448 = int_to_ptr.vmem [resolvable:$true] %s447
          %450 = dma.vmem_to_hbm [thread:$0]  %s448, 128, %s445, %s434
        $region52: #{tpu_custom_call.1} parent=35 // pred_fallthru
          _
      $region36: #{tpu_custom_call.1} parent=5 // pred_fallthru
        _
      %p451 = scmp.le.s32.totalorder 2, %s19
      // Predicated region
      $region53: #{tpu_custom_call.1} parent=5 // pred_check
        %p452 = pneg %p451
      $region54: #{tpu_custom_call.1} parent=5 // pred_check_branch
        %454 = sbr.rel (%p452) target = $region56
      $region55: #{tpu_custom_call.1} parent=5 // pred_region
        %s455 = ssub.s32 %s19, 2
        // Predicated region
        $region57: #{tpu_custom_call.1} parent=55 // pred_check
          %p456 = pneg %p142
        $region58: #{tpu_custom_call.1} parent=55 // pred_check_branch
          %458 = sbr.rel (%p456) target = $region60
        $region59: #{tpu_custom_call.1} parent=55 // pred_region
          %s459 = sand.u32 %s127, 1
          %s460 = scalar_lea.sflag [#allocation4], %s459
          %s461 = sand.u32 %s127, 1
          %s462 = smul.addr %s461, 8
          %s463 = scalar_lea.vmem [#allocation8], %s462
          %464 = dma.done %s460, 128
        $region60: #{tpu_custom_call.1} parent=55 // pred_fallthru
          _
      $region56: #{tpu_custom_call.1} parent=5 // pred_fallthru
        _
    $region6: #{tpu_custom_call.1} parent=1 // loop_footer
      %s23 = sadd.s32 1, %s19
    $region7: #{tpu_custom_call.1} parent=1 // loop_footer_branch
      %18 = sbr.rel target = $region3
    $region8: #{tpu_custom_call.1} parent=1 // loop_exit
      _
    %465 = vsyncpa [#allocation3], 1
    %s466 = scalar_lea.sflag [#allocation3], 1
    %467 = vsyncpa %s466, 1
    %468 = vsyncpa [#allocation6], 1
    %s469 = scalar_lea.sflag [#allocation6], 1
    %470 = vsyncpa %s469, 1
    %471 = vsyncpa [#allocation4], 1
    %s472 = scalar_lea.sflag [#allocation4], 1
    %473 = vsyncpa %s472, 1

</llo_original>
